<compile_context>
chip_gen: v5e
topology: v5e:2x2
jax: 0.10.0
libtpu: 0.0.40
codegen_flags: <defaults>
</compile_context>

<pallas_src>
import math

import jax
import jax.numpy as jnp
from jax import lax
from jax.experimental import pallas as pl
from jax.experimental.pallas import tpu as pltpu

_LANE = 128
_SUB = 8


def _round_up(v: int, m: int) -> int:
    return (v + m - 1) // m * m


def _vmem_limit_bytes() -> int:
    """Scoped-VMEM budget: ~half of physical VMEM, clamped to [32, 100] MiB."""
    try:
        info = pltpu.get_tpu_info()
        for attr in ("vmem_capacity_bytes", "vmem_size_bytes", "vmem_bytes"):
            cap = getattr(info, attr, None)
            if cap:
                return int(min(100 * 1024 * 1024, max(32 * 1024 * 1024, cap // 2)))
    except Exception:
        pass
    return 32 * 1024 * 1024  # safe on v5e/v6e/v7x


def _spec(block_shape, index_map, *, single_buffer: bool = False):
    """BlockSpec; grid-invariant blocks get a single pipeline buffer."""
    if single_buffer:
        try:
            return pl.BlockSpec(block_shape, index_map, pipeline_mode=pl.Buffered(1))
        except (TypeError, AttributeError):
            pass  # older JAX: fall back to default double buffering
    return pl.BlockSpec(block_shape, index_map)


def _linrelu_kernel(x_ref, w_ref, brow_ref, o_ref):
    # z = x @ W - (bias @ W)  ==  (x - bias) @ W   (bias term hoisted to wrapper).
    w = w_ref[...]
    x = x_ref[...].astype(w.dtype)          # bf16 MXU feed when enabled; no-op for f32
    z = jnp.dot(x, w, preferred_element_type=jnp.float32)
    z = z - brow_ref[...]                   # [tm, tn] - [1, tn], f32
    # sgelu(z) = z * erf(z / sqrt(2)), slope = 1
    out = z * lax.erf(z * (1.0 / math.sqrt(2.0)))
    o_ref[...] = out.astype(o_ref.dtype)


def linrelu_forward(x, weights, bias, *, block_m: int = 512, block_n: int = 512,
                    mxu_dtype=None):
    """x: [B, in_features], weights: [in_features, out_features], bias: [in_features]."""
    B, in_f = x.shape
    in_f2, out_f = weights.shape
    assert in_f2 == in_f and bias.shape == (in_f,)

    # Hoisted bias term in f32: (x - b) @ W == x @ W - (b @ W).
    b_row = bias.astype(jnp.float32)[None, :] @ weights.astype(jnp.float32)  # [1, out_f]

    w = weights if mxu_dtype is None else weights.astype(mxu_dtype)

    # K: full-dim blocks are legal; only align to the 8-sublane granule if needed
    # (no-op / no copy for typical in_features that are multiples of 8).
    if in_f % _SUB:
        K = _round_up(in_f, _SUB)
        x = jnp.pad(x, ((0, 0), (0, K - in_f)))
        w = jnp.pad(w, ((0, K - in_f), (0, 0)))
    else:
        K = in_f

    # N: one-time zero-pad of the small W / bias-row to a lane-dense 128-multiple
    # so output stores are unmasked.  Padded columns give z == 0, sgelu(0) == 0.
    N = _round_up(out_f, _LANE)
    if N != out_f:
        w = jnp.pad(w, ((0, 0), (0, N - out_f)))
        b_row = jnp.pad(b_row, ((0, 0), (0, N - out_f)))

    # N tiling (W streams instead of being fully resident for large out_features).
    tn = min(_round_up(block_n, _LANE), N)
    while N % tn:
        tn -= _LANE
    grid_n = N // tn

    # Batch tiling: no M padding; Pallas masks the ragged last tile on write.
    tm = min(_round_up(block_m, _SUB), _round_up(B, _SUB))
    if grid_n * pl.cdiv(B, tm) < 2 and B > _SUB:
        tm = _round_up(pl.cdiv(B, 2), _SUB)   # >= 2 grid steps so both v7x TCs work
    grid_m = pl.cdiv(B, tm)

    resident_w = grid_n == 1  # W / bias-row block index is grid-invariant

    itemsize = jnp.dtype(x.dtype).itemsize

    def _call(single_buffer):
        return pl.pallas_call(
            _linrelu_kernel,
            out_shape=jax.ShapeDtypeStruct((B, N), x.dtype),
            grid=(grid_m, grid_n),
            in_specs=[
                pl.BlockSpec((tm, K), lambda i, j: (i, 0)),                  # x tile, streamed
                _spec((K, tn), lambda i, j: (0, j), single_buffer=single_buffer),  # W
                _spec((1, tn), lambda i, j: (0, j), single_buffer=single_buffer),  # bias row
            ],
            out_specs=pl.BlockSpec((tm, tn), lambda i, j: (i, j)),
            compiler_params=pltpu.CompilerParams(
                dimension_semantics=("parallel", "parallel"),
                vmem_limit_bytes=_vmem_limit_bytes(),
            ),
            cost_estimate=pl.CostEstimate(
                flops=2 * B * K * N,
                transcendentals=B * N,
                bytes_accessed=(B * K + K * N + N + B * N) * itemsize,
            ),
        )(x, w, b_row)

    try:
        out = _call(resident_w)
    except Exception:
        if not resident_w:
            raise
        out = _call(False)  # fallback if single-buffer pipeline mode is unsupported

    return out if N == out_f else out[:, :out_f]


def linrelu_forward_units(x, weights, bias, *, block_m: int = 512, mxu_dtype=None):
    """Batched NAM variant: U independent LinReLU units in one pallas_call.

    x: [U, B, in_f], weights: [U, in_f, out_f], bias: [U, in_f] -> [U, B, out_f].
    """
    U, B, in_f = x.shape
    assert weights.shape[:2] == (U, in_f) and bias.shape == (U, in_f)
    out_f = weights.shape[2]

    b_row = jnp.einsum("uk,ukn->un", bias.astype(jnp.float32),
                       weights.astype(jnp.float32))[:, None, :]          # [U, 1, out_f]
    w = weights if mxu_dtype is None else weights.astype(mxu_dtype)

    if in_f % _SUB:
        K = _round_up(in_f, _SUB)
        x = jnp.pad(x, ((0, 0), (0, 0), (0, K - in_f)))
        w = jnp.pad(w, ((0, 0), (0, K - in_f), (0, 0)))
    else:
        K = in_f

    N = _round_up(out_f, _LANE)
    if N != out_f:
        w = jnp.pad(w, ((0, 0), (0, 0), (0, N - out_f)))
        b_row = jnp.pad(b_row, ((0, 0), (0, 0), (0, N - out_f)))

    tm = min(_round_up(block_m, _SUB), _round_up(B, _SUB))
    grid_m = pl.cdiv(B, tm)

    itemsize = jnp.dtype(x.dtype).itemsize
    out = pl.pallas_call(
        _linrelu_kernel,
        out_shape=jax.ShapeDtypeStruct((U, B, N), x.dtype),
        grid=(U, grid_m),  # unit axis outer: per-unit W held across the inner m steps
        in_specs=[
            pl.BlockSpec((None, tm, K), lambda u, i: (u, i, 0)),
            pl.BlockSpec((None, K, N), lambda u, i: (u, 0, 0)),
            pl.BlockSpec((None, 1, N), lambda u, i: (u, 0, 0)),
        ],
        out_specs=pl.BlockSpec((None, tm, N), lambda u, i: (u, i, 0)),
        compiler_params=pltpu.CompilerParams(
            dimension_semantics=("parallel", "parallel"),
            vmem_limit_bytes=_vmem_limit_bytes(),
        ),
        cost_estimate=pl.CostEstimate(
            flops=2 * U * B * K * N,
            transcendentals=U * B * N,
            bytes_accessed=U * (B * K + K * N + N + B * N) * itemsize,
        ),
    )(x, w, b_row)
    return out if N == out_f else out[..., :out_f]


def _reference(x, weights, bias):
    z = (x - bias[None, :]) @ weights
    return z * lax.erf(z / jnp.sqrt(2.0))


def _reference_units(x, weights, bias):
    z = jnp.matmul(x - bias[:, None, :], weights)
    return z * lax.erf(z / jnp.sqrt(2.0))


if __name__ == "__main__":
    key = jax.random.PRNGKey(0)
    k_x, k_w, k_b, k_x2, k_w2, k_b2, k_x3, k_w3, k_b3, k_xu, k_wu, k_bu = jax.random.split(key, 12)

    # Case 1: module-sized small problem (batch=8, in=32, out=32), exact f32 path.
    B, in_f, out_f = 8, 32, 32
    limit = math.sqrt(6.0 / (in_f + out_f))      # xavier_uniform_
    w = jax.random.uniform(k_w, (in_f, out_f), jnp.float32, -limit, limit)
    b = 0.5 * jax.random.truncated_normal(k_b, -2.0, 2.0, (in_f,), dtype=jnp.float32)
    x = jax.random.normal(k_x, (B, in_f), dtype=jnp.float32)

    out = jax.block_until_ready(linrelu_forward(x, w, b))
    ref = _reference(x, w, b)
    assert out.shape == (B, out_f)
    assert jnp.allclose(out, ref, atol=1e-4, rtol=1e-4), \
        f"case1 max abs err {jnp.max(jnp.abs(out - ref))}"

    # Case 2: ragged batch tiling (300 rows, tm=128 -> 3-step grid), odd K/N.
    B2, in_f2, out_f2 = 300, 40, 48
    limit2 = math.sqrt(6.0 / (in_f2 + out_f2))
    w2 = jax.random.uniform(k_w2, (in_f2, out_f2), jnp.float32, -limit2, limit2)
    b2 = 0.5 * jax.random.truncated_normal(k_b2, -2.0, 2.0, (in_f2,), dtype=jnp.float32)
    x2 = jax.random.normal(k_x2, (B2, in_f2), dtype=jnp.float32)

    out2 = jax.block_until_ready(linrelu_forward(x2, w2, b2, block_m=128))
    ref2 = _reference(x2, w2, b2)
    assert out2.shape == (B2, out_f2)
    assert jnp.allclose(out2, ref2, atol=1e-4, rtol=1e-4), \
        f"case2 max abs err {jnp.max(jnp.abs(out2 - ref2))}"

    # Case 2b: bf16 MXU feed on the same shapes (looser tolerance).
    out2b = jax.block_until_ready(
        linrelu_forward(x2, w2, b2, block_m=128, mxu_dtype=jnp.bfloat16))
    assert jnp.allclose(out2b, ref2, atol=5e-2, rtol=5e-2), \
        f"case2b max abs err {jnp.max(jnp.abs(out2b - ref2))}"

    # Case 3: N-tiled grid (out=256, tn=128 -> 2 N-steps, W streamed).
    B3, in_f3, out_f3 = 64, 32, 256
    limit3 = math.sqrt(6.0 / (in_f3 + out_f3))
    w3 = jax.random.uniform(k_w3, (in_f3, out_f3), jnp.float32, -limit3, limit3)
    b3 = 0.5 * jax.random.truncated_normal(k_b3, -2.0, 2.0, (in_f3,), dtype=jnp.float32)
    x3 = jax.random.normal(k_x3, (B3, in_f3), dtype=jnp.float32)

    out3 = jax.block_until_ready(linrelu_forward(x3, w3, b3, block_n=128))
    ref3 = _reference(x3, w3, b3)
    assert out3.shape == (B3, out_f3)
    assert jnp.allclose(out3, ref3, atol=1e-4, rtol=1e-4), \
        f"case3 max abs err {jnp.max(jnp.abs(out3 - ref3))}"

    # Case 4: batched-units NAM regime: 4 independent 32->32 nets in one call.
    U, Bu, in_fu, out_fu = 4, 16, 32, 32
    limitu = math.sqrt(6.0 / (in_fu + out_fu))
    wu = jax.random.uniform(k_wu, (U, in_fu, out_fu), jnp.float32, -limitu, limitu)
    bu = 0.5 * jax.random.truncated_normal(k_bu, -2.0, 2.0, (U, in_fu), dtype=jnp.float32)
    xu = jax.random.normal(k_xu, (U, Bu, in_fu), dtype=jnp.float32)

    outu = jax.block_until_ready(linrelu_forward_units(xu, wu, bu))
    refu = _reference_units(xu, wu, bu)
    assert outu.shape == (U, Bu, out_fu)
    assert jnp.allclose(outu, refu, atol=1e-4, rtol=1e-4), \
        f"case4 max abs err {jnp.max(jnp.abs(outu - refu))}"

    print("KERNEL_OK")
</pallas_src>

<mosaic_0001>
module attributes {stable_mosaic.version = 11 : i64} {
  func.func @_linrelu_kernel(%arg0: i32, %arg1: i32, %arg2: memref<8x32xf32, #tpu.memory_space<vmem>>, %arg3: memref<32x128xf32, #tpu.memory_space<vmem>>, %arg4: memref<1x128xf32, #tpu.memory_space<vmem>>, %arg5: memref<8x128xf32, #tpu.memory_space<vmem>>) attributes {dimension_semantics = [#tpu.dimension_semantics<parallel>, #tpu.dimension_semantics<parallel>], iteration_bounds = array<i64: 1, 1>, scalar_prefetch = 0 : i64, scratch_operands = 0 : i64, tpu.core_type = #tpu.core_type<tc>, window_params = [{transform_indices = @transform_0, window_bounds = array<i64: 8, 32>}, {pipeline_mode = #tpu.pipeline_mode<synchronous>, transform_indices = @transform_1, window_bounds = array<i64: 32, 128>}, {pipeline_mode = #tpu.pipeline_mode<synchronous>, transform_indices = @transform_2, window_bounds = array<i64: 1, 128>}, {transform_indices = @transform_3, window_bounds = array<i64: 8, 128>}]} {
    %c0 = arith.constant 0 : index
    %c0_0 = arith.constant 0 : index
    %0 = vector.load %arg3[%c0, %c0_0] : memref<32x128xf32, #tpu.memory_space<vmem>>, vector<32x128xf32>
    %c0_1 = arith.constant 0 : index
    %c0_2 = arith.constant 0 : index
    %1 = vector.load %arg2[%c0_1, %c0_2] : memref<8x32xf32, #tpu.memory_space<vmem>>, vector<8x32xf32>
    %cst = arith.constant dense<0.000000e+00> : vector<8x128xf32>
    %2 = tpu.matmul %1, %0, %cst {dimension_numbers = #tpu.dot_dimension_numbers<[1], [0], [0], [1], [0, 0, 1, 1], [], []>} : vector<8x32xf32>, vector<32x128xf32>, vector<8x128xf32> -> vector<8x128xf32>
    %c0_3 = arith.constant 0 : index
    %c0_4 = arith.constant 0 : index
    %3 = vector.load %arg4[%c0_3, %c0_4] : memref<1x128xf32, #tpu.memory_space<vmem>>, vector<1x128xf32>
    %4 = vector.broadcast %3 : vector<1x128xf32> to vector<8x128xf32>
    %5 = arith.subf %2, %4 : vector<8x128xf32>
    %cst_5 = arith.constant 0.707106769 : f32
    %6 = vector.broadcast %cst_5 : f32 to vector<8x128xf32>
    %7 = arith.mulf %5, %6 : vector<8x128xf32>
    %8 = math.erf %7 : vector<8x128xf32>
    %9 = arith.mulf %5, %8 : vector<8x128xf32>
    %c0_6 = arith.constant 0 : index
    %c0_7 = arith.constant 0 : index
    %10 = vector.load %arg5[%c0_6, %c0_7] : memref<8x128xf32, #tpu.memory_space<vmem>>, vector<8x128xf32>
    tpu.vector_store %arg5[%c0_6, %c0_7], %9 {strides = array<i32>} : memref<8x128xf32, #tpu.memory_space<vmem>>, vector<8x128xf32>,
    return
  }
  func.func @transform_0(%arg0: i32, %arg1: i32) -> (i32, i32) {
    %c0_i32 = arith.constant 0 : i32
    %c0_i32_0 = arith.constant 0 : i32
    return %arg0, %c0_i32 : i32, i32
  }
  func.func @transform_1(%arg0: i32, %arg1: i32) -> (i32, i32) {
    %c0_i32 = arith.constant 0 : i32
    %c0_i32_0 = arith.constant 0 : i32
    return %c0_i32, %arg1 : i32, i32
  }
  func.func @transform_2(%arg0: i32, %arg1: i32) -> (i32, i32) {
    %c0_i32 = arith.constant 0 : i32
    %c0_i32_0 = arith.constant 0 : i32
    return %c0_i32, %arg1 : i32, i32
  }
  func.func @transform_3(%arg0: i32, %arg1: i32) -> (i32, i32) {
    %c0_i32 = arith.constant 0 : i32
    return %arg0, %arg1 : i32, i32
  }
}

module attributes {stable_mosaic.version = 11 : i64} {
  func.func @_linrelu_kernel(%arg0: i32, %arg1: i32, %arg2: memref<8x32xf32, #tpu.memory_space<vmem>>, %arg3: memref<32x128xf32, #tpu.memory_space<vmem>>, %arg4: memref<1x128xf32, #tpu.memory_space<vmem>>, %arg5: memref<8x128xf32, #tpu.memory_space<vmem>>) attributes {dimension_semantics = [#tpu.dimension_semantics<parallel>, #tpu.dimension_semantics<parallel>], iteration_bounds = array<i64: 1, 1>, scalar_prefetch = 0 : i64, scratch_operands = 0 : i64, tpu.core_type = #tpu.core_type<tc>, window_params = [{transform_indices = @transform_0, window_bounds = array<i64: 8, 32>}, {transform_indices = @transform_1, window_bounds = array<i64: 32, 128>}, {transform_indices = @transform_2, window_bounds = array<i64: 1, 128>}, {transform_indices = @transform_3, window_bounds = array<i64: 8, 128>}]} {
    %c0 = arith.constant 0 : index
    %c0_0 = arith.constant 0 : index
    %0 = vector.load %arg3[%c0, %c0_0] : memref<32x128xf32, #tpu.memory_space<vmem>>, vector<32x128xf32>
    %c0_1 = arith.constant 0 : index
    %c0_2 = arith.constant 0 : index
    %1 = vector.load %arg2[%c0_1, %c0_2] : memref<8x32xf32, #tpu.memory_space<vmem>>, vector<8x32xf32>
    %cst = arith.constant dense<0.000000e+00> : vector<8x128xf32>
    %2 = tpu.matmul %1, %0, %cst {dimension_numbers = #tpu.dot_dimension_numbers<[1], [0], [0], [1], [0, 0, 1, 1], [], []>} : vector<8x32xf32>, vector<32x128xf32>, vector<8x128xf32> -> vector<8x128xf32>
    %c0_3 = arith.constant 0 : index
    %c0_4 = arith.constant 0 : index
    %3 = vector.load %arg4[%c0_3, %c0_4] : memref<1x128xf32, #tpu.memory_space<vmem>>, vector<1x128xf32>
    %4 = vector.broadcast %3 : vector<1x128xf32> to vector<8x128xf32>
    %5 = arith.subf %2, %4 : vector<8x128xf32>
    %cst_5 = arith.constant 0.707106769 : f32
    %6 = vector.broadcast %cst_5 : f32 to vector<8x128xf32>
    %7 = arith.mulf %5, %6 : vector<8x128xf32>
    %8 = math.erf %7 : vector<8x128xf32>
    %9 = arith.mulf %5, %8 : vector<8x128xf32>
    %c0_6 = arith.constant 0 : index
    %c0_7 = arith.constant 0 : index
    %10 = vector.load %arg5[%c0_6, %c0_7] : memref<8x128xf32, #tpu.memory_space<vmem>>, vector<8x128xf32>
    tpu.vector_store %arg5[%c0_6, %c0_7], %9 {strides = array<i32>} : memref<8x128xf32, #tpu.memory_space<vmem>>, vector<8x128xf32>,
    return
  }
  func.func @transform_0(%arg0: i32, %arg1: i32) -> (i32, i32) {
    %c0_i32 = arith.constant 0 : i32
    %c0_i32_0 = arith.constant 0 : i32
    return %arg0, %c0_i32 : i32, i32
  }
  func.func @transform_1(%arg0: i32, %arg1: i32) -> (i32, i32) {
    %c0_i32 = arith.constant 0 : i32
    %c0_i32_0 = arith.constant 0 : i32
    return %c0_i32, %arg1 : i32, i32
  }
  func.func @transform_2(%arg0: i32, %arg1: i32) -> (i32, i32) {
    %c0_i32 = arith.constant 0 : i32
    %c0_i32_0 = arith.constant 0 : i32
    return %c0_i32, %arg1 : i32, i32
  }
  func.func @transform_3(%arg0: i32, %arg1: i32) -> (i32, i32) {
    %c0_i32 = arith.constant 0 : i32
    return %arg0, %arg1 : i32, i32
  }
}

</mosaic_0001>

<llo_original>
// kernel: tpu_custom_call.1
$region0: #{tpu_custom_call.1}
  #allocation0 [shape = 'u32[]', space=smem, size = 0x4, offset = 0x4, fixed_abs, tag = 'smem constant byte address 0x4 - core index']
  #allocation1 [shape = 'u32[72,128]{1,0:T(1,128)}', space=vmem, size = 0x9000, scoped, tag = 'internal scratch']
  %s0 = inlined_call_operand.hbm [shape: f32[8,32], index: 0, kind: input, shape index: {}]
  %s1 = inlined_call_operand.hbm [shape: f32[32,128], index: 1, kind: input, shape index: {}]
  %s2 = inlined_call_operand.vmem [shape: f32[1,128], index: 2, kind: input, shape index: {}]
  %s3 = inlined_call_operand.hbm [shape: f32[8,128], index: 3, kind: output, shape index: {}]
  %s4 = sld [smem:[#allocation0]]
  $region30: #{tpu_custom_call.1} parent=0
    _
  %s6 = ssub.s32 1, %s4
  %s7 = scalar_select 0, %s6, %s4
  $region1: #{tpu_custom_call.1} parent=0
    #allocation2 [shape = 'u8[4096]{0}', space=vmem, size = 0x1000, scoped, tag = 'input window, operand 0, single buffered']
    #allocation3 [shape = 's32[1]{0}', space=sflag, size = 0x4, scoped, tag = 'scoped memory for tpu_custom_call.1']
    #allocation4 [shape = 's32[1]{0}', space=sflag, size = 0x4, scoped, tag = 'scoped memory for tpu_custom_call.1']
    #allocation5 [shape = 'u8[16384]{0}', space=vmem, size = 0x4000, scoped, tag = 'input window, operand 1, single buffered']
    #allocation6 [shape = 's32[1]{0}', space=sflag, size = 0x4, scoped, tag = 'scoped memory for tpu_custom_call.1']
    #allocation7 [shape = 'u8[4096]{0}', space=vmem, size = 0x1000, scoped, tag = 'output window, operand 0, single buffered']
    %8 = vsyncpa [#allocation3], 0
    %9 = vsyncpa [#allocation6], 0
    %10 = vsyncpa [#allocation4], 0
    // Predicated region
    $region2: #{tpu_custom_call.1} parent=1 // pred_check
      _
    $region3: #{tpu_custom_call.1} parent=1 // pred_check_branch
      %12 = sbr.rel (0) target = $region5
    $region4: #{tpu_custom_call.1} parent=1 // pred_region
      %14 = vsyncadd [#allocation3], 0
      %s16 = sshll.u32 %s0, 4
      %s17 = int_to_ptr.hbm [resolvable:$true] %s16
      %s18 = sshll.u32 [#allocation2], 4
      %s19 = int_to_ptr.vmem [resolvable:$true] %s18
      %21 = dma.hbm_to_vmem [thread:$0]  %s17, 128, %s19, [#allocation3]
    $region5: #{tpu_custom_call.1} parent=1 // pred_fallthru
      _
    // Predicated region
    $region6: #{tpu_custom_call.1} parent=1 // pred_check
      _
    $region7: #{tpu_custom_call.1} parent=1 // pred_check_branch
      %23 = sbr.rel (0) target = $region9
    $region8: #{tpu_custom_call.1} parent=1 // pred_region
      %25 = vsyncadd [#allocation6], 0
      %s26 = sshll.u32 %s1, 4
      %s27 = int_to_ptr.hbm [resolvable:$true] %s26
      %s28 = sshll.u32 [#allocation5], 4
      %s29 = int_to_ptr.vmem [resolvable:$true] %s28
      %34 = dma.hbm_to_vmem [thread:$0]  %s27, 512, %s29, [#allocation6], 128, 128, 8
    $region9: #{tpu_custom_call.1} parent=1 // pred_fallthru
      _
    // Predicated region
    $region10: #{tpu_custom_call.1} parent=1 // pred_check
      _
    $region11: #{tpu_custom_call.1} parent=1 // pred_check_branch
      %36 = sbr.rel (0) target = $region13
    $region12: #{tpu_custom_call.1} parent=1 // pred_region
      _
    $region13: #{tpu_custom_call.1} parent=1 // pred_fallthru
      _
    // Predicated region
    $region14: #{tpu_custom_call.1} parent=1 // pred_check
      _
    $region15: #{tpu_custom_call.1} parent=1 // pred_check_branch
      %38 = sbr.rel (0) target = $region17
    $region16: #{tpu_custom_call.1} parent=1 // pred_region
      %40 = dma.done [#allocation3], 128
    $region17: #{tpu_custom_call.1} parent=1 // pred_fallthru
      _
    // Predicated region
    $region18: #{tpu_custom_call.1} parent=1 // pred_check
      _
    $region19: #{tpu_custom_call.1} parent=1 // pred_check_branch
      %42 = sbr.rel (0) target = $region21
    $region20: #{tpu_custom_call.1} parent=1 // pred_region
      %44 = dma.done [#allocation6], 512
    $region21: #{tpu_custom_call.1} parent=1 // pred_fallthru
      _
    %v45 = vld [vmem:[#allocation5] sm:$0xff]
    %v46 = vld [vmem:[#allocation5 + $0x8] sm:$0xff]
    %v47 = vld [vmem:[#allocation5 + $0x10] sm:$0xff]
    %v48 = vld [vmem:[#allocation5 + $0x18] sm:$0xff]
    %v49 = vld [vmem:[#allocation2] sm:$0xff]
    %vm50 = vcmask 261120
    %v52 = vsel %vm50, %v49, 0
    %54 = vmatpush.msra.mxu0 0.0
    %55 = vmatpush.msra.mxu0 0.0
    %56 = vmatpush.msra.mxu0 0.0
    %57 = vmatpush.msra.mxu0 0.0
    %58 = vmatpush.msra.mxu0 0.0
    %59 = vmatpush.msra.mxu0 0.0
    %60 = vmatpush.msra.mxu0 0.0
    %61 = vmatpush.msra.mxu0 0.0
    %62 = vmatpush.msra.mxu0 0.0
    %63 = vmatpush.msra.mxu0 0.0
    %64 = vmatpush.msra.mxu0 0.0
    %65 = vmatpush.msra.mxu0 0.0
    %66 = vmatpush.msra.mxu0 %v48
    %67 = vmatpush.msra.mxu0 %v47
    %68 = vmatpush.msra.mxu0 %v46
    %69 = vmatpush.msra.mxu0 %v45
    %70 = vmatmul.f32.gmra.mxu0 %v52
    %v71 = vpop.f32.mrf.mxu0
    %v72 = vadd.f32 0.0, %v71
    %73 = vdwg.mxu0
    %v74 = vld [vmem:[%s2] sm:$0x1]
    %v76 = vperm.slane %v74, 0
    %v78 = vsub.f32 %v72, %v76
    %v79 = vmul.f32 %v78, 0.70710677
    %v80 = vmul.f32 %v79, %v79
    %v81 = vmin.f32 16.0, %v80
    %v82 = vmul.f32 %v81, 2.1237322e-06
    %v83 = vadd.f32 %v82, 0.00028619796
    %v84 = vmul.f32 %v81, %v83
    %v85 = vadd.f32 %v84, 0.0036580483
    %v86 = vmul.f32 %v81, %v85
    %v87 = vadd.f32 %v86, 0.05243302
    %v88 = vmul.f32 %v81, %v87
    %v89 = vadd.f32 %v88, 0.18741608
    %v90 = vmul.f32 %v81, %v89
    %v91 = vadd.f32 %v90, 1.1283791
    %v92 = vmul.f32 %v79, %v91
    %v93 = vmul.f32 %v81, 3.8918573e-05
    %v94 = vadd.f32 %v93, 0.001143296
    %v95 = vmul.f32 %v81, %v94
    %v96 = vadd.f32 %v95, 0.014752088
    %v97 = vmul.f32 %v81, %v96
    %v98 = vadd.f32 %v97, 0.112945676
    %v99 = vmul.f32 %v81, %v98
    %v100 = vadd.f32 %v99, 0.4994258
    %v101 = vmul.f32 %v81, %v100
    %v102 = vadd.f32 %v101, 1.0
    %v103 = vrcp.pop %v102
    %v104 = vmul.f32 %v102, %v103
    %v105 = vsub.f32 1.0, %v104
    %v106 = vmul.f32 %v103, %v105
    %v107 = vadd.f32 %v103, %v106
    %vm108 = vweird.f32 %v102
    %vm109 = vweird.f32 %v103
    %vm110 = vmor %vm108, %vm109
    %v111 = vsel %vm110, %v103, %v107
    %v112 = vand.u32 2147483647, %v102
    %vm113 = vcmp.eq.f32.partialorder %v112, 8.507059e+37
    %v114 = vand.u32 %v102, 2147483648
    %v115 = vor.u32 1.1754944e-38, %v114
    %v116 = vsel %vm113, %v115, %v111
    %v117 = vmul.f32 %v92, %v116
    %v118 = vmin.f32 %v117, 1.0
    %v119 = vmax.f32 %v118, -1.0
    %v120 = vmul.f32 %v78, %v119
    %121 = vst [vmem:[#allocation7] sm:$0xff] %v120
    // Predicated region
    $region22: #{tpu_custom_call.1} parent=1 // pred_check
      _
    $region23: #{tpu_custom_call.1} parent=1 // pred_check_branch
      %123 = sbr.rel (0) target = $region25
    $region24: #{tpu_custom_call.1} parent=1 // pred_region
      %125 = vsyncadd [#allocation4], 0
      %s127 = sshll.u32 [#allocation7], 4
      %s128 = int_to_ptr.vmem [resolvable:$true] %s127
      %s129 = sshll.u32 %s3, 4
      %s130 = int_to_ptr.hbm [resolvable:$true] %s129
      %132 = dma.vmem_to_hbm [thread:$0]  %s128, 128, %s130, [#allocation4]
    $region25: #{tpu_custom_call.1} parent=1 // pred_fallthru
      _
    // Predicated region
    $region26: #{tpu_custom_call.1} parent=1 // pred_check
      _
    $region27: #{tpu_custom_call.1} parent=1 // pred_check_branch
      %134 = sbr.rel (0) target = $region29
    $region28: #{tpu_custom_call.1} parent=1 // pred_region
      %136 = dma.done [#allocation4], 128
    $region29: #{tpu_custom_call.1} parent=1 // pred_fallthru
      _
    %137 = vsyncpa [#allocation3], 1
    %138 = vsyncpa [#allocation6], 1
    %139 = vsyncpa [#allocation4], 1

// kernel: tpu_custom_call.1
$region0: #{tpu_custom_call.1}
  #allocation0 [shape = 'u32[]', space=smem, size = 0x4, offset = 0x4, fixed_abs, tag = 'smem constant byte address 0x4 - core index']
  #allocation1 [shape = 'u32[72,128]{1,0:T(1,128)}', space=vmem, size = 0x9000, scoped, tag = 'internal scratch']
  %s0 = inlined_call_operand.hbm [shape: f32[8,32], index: 0, kind: input, shape index: {}]
  %s1 = inlined_call_operand.hbm [shape: f32[32,128], index: 1, kind: input, shape index: {}]
  %s2 = inlined_call_operand.vmem [shape: f32[1,128], index: 2, kind: input, shape index: {}]
  %s3 = inlined_call_operand.hbm [shape: f32[8,128], index: 3, kind: output, shape index: {}]
  %s4 = sld [smem:[#allocation0]]
  $region30: #{tpu_custom_call.1} parent=0
    _
  %s6 = ssub.s32 1, %s4
  %s7 = scalar_select 0, %s6, %s4
  $region1: #{tpu_custom_call.1} parent=0
    #allocation2 [shape = 'u8[4096]{0}', space=vmem, size = 0x1000, scoped, tag = 'input window, operand 0, single buffered']
    #allocation3 [shape = 's32[1]{0}', space=sflag, size = 0x4, scoped, tag = 'scoped memory for tpu_custom_call.1']
    #allocation4 [shape = 's32[1]{0}', space=sflag, size = 0x4, scoped, tag = 'scoped memory for tpu_custom_call.1']
    #allocation5 [shape = 'u8[16384]{0}', space=vmem, size = 0x4000, scoped, tag = 'input window, operand 1, single buffered']
    #allocation6 [shape = 's32[1]{0}', space=sflag, size = 0x4, scoped, tag = 'scoped memory for tpu_custom_call.1']
    #allocation7 [shape = 'u8[4096]{0}', space=vmem, size = 0x1000, scoped, tag = 'output window, operand 0, single buffered']
    %8 = vsyncpa [#allocation3], 0
    %9 = vsyncpa [#allocation6], 0
    %10 = vsyncpa [#allocation4], 0
    // Predicated region
    $region2: #{tpu_custom_call.1} parent=1 // pred_check
      _
    $region3: #{tpu_custom_call.1} parent=1 // pred_check_branch
      %12 = sbr.rel (0) target = $region5
    $region4: #{tpu_custom_call.1} parent=1 // pred_region
      %14 = vsyncadd [#allocation3], 0
      %s16 = sshll.u32 %s0, 4
      %s17 = int_to_ptr.hbm [resolvable:$true] %s16
      %s18 = sshll.u32 [#allocation2], 4
      %s19 = int_to_ptr.vmem [resolvable:$true] %s18
      %21 = dma.hbm_to_vmem [thread:$0]  %s17, 128, %s19, [#allocation3]
    $region5: #{tpu_custom_call.1} parent=1 // pred_fallthru
      _
    // Predicated region
    $region6: #{tpu_custom_call.1} parent=1 // pred_check
      _
    $region7: #{tpu_custom_call.1} parent=1 // pred_check_branch
      %23 = sbr.rel (0) target = $region9
    $region8: #{tpu_custom_call.1} parent=1 // pred_region
      %25 = vsyncadd [#allocation6], 0
      %s26 = sshll.u32 %s1, 4
      %s27 = int_to_ptr.hbm [resolvable:$true] %s26
      %s28 = sshll.u32 [#allocation5], 4
      %s29 = int_to_ptr.vmem [resolvable:$true] %s28
      %34 = dma.hbm_to_vmem [thread:$0]  %s27, 512, %s29, [#allocation6], 128, 128, 8
    $region9: #{tpu_custom_call.1} parent=1 // pred_fallthru
      _
    // Predicated region
    $region10: #{tpu_custom_call.1} parent=1 // pred_check
      _
    $region11: #{tpu_custom_call.1} parent=1 // pred_check_branch
      %36 = sbr.rel (0) target = $region13
    $region12: #{tpu_custom_call.1} parent=1 // pred_region
      _
    $region13: #{tpu_custom_call.1} parent=1 // pred_fallthru
      _
    // Predicated region
    $region14: #{tpu_custom_call.1} parent=1 // pred_check
      _
    $region15: #{tpu_custom_call.1} parent=1 // pred_check_branch
      %38 = sbr.rel (0) target = $region17
    $region16: #{tpu_custom_call.1} parent=1 // pred_region
      %40 = dma.done [#allocation3], 128
    $region17: #{tpu_custom_call.1} parent=1 // pred_fallthru
      _
    // Predicated region
    $region18: #{tpu_custom_call.1} parent=1 // pred_check
      _
    $region19: #{tpu_custom_call.1} parent=1 // pred_check_branch
      %42 = sbr.rel (0) target = $region21
    $region20: #{tpu_custom_call.1} parent=1 // pred_region
      %44 = dma.done [#allocation6], 512
    $region21: #{tpu_custom_call.1} parent=1 // pred_fallthru
      _
    %v45 = vld [vmem:[#allocation5] sm:$0xff]
    %v46 = vld [vmem:[#allocation5 + $0x8] sm:$0xff]
    %v47 = vld [vmem:[#allocation5 + $0x10] sm:$0xff]
    %v48 = vld [vmem:[#allocation5 + $0x18] sm:$0xff]
    %v49 = vld [vmem:[#allocation2] sm:$0xff]
    %vm50 = vcmask 261120
    %v52 = vsel %vm50, %v49, 0
    %54 = vmatpush.msra.mxu0 0.0
    %55 = vmatpush.msra.mxu0 0.0
    %56 = vmatpush.msra.mxu0 0.0
    %57 = vmatpush.msra.mxu0 0.0
    %58 = vmatpush.msra.mxu0 0.0
    %59 = vmatpush.msra.mxu0 0.0
    %60 = vmatpush.msra.mxu0 0.0
    %61 = vmatpush.msra.mxu0 0.0
    %62 = vmatpush.msra.mxu0 0.0
    %63 = vmatpush.msra.mxu0 0.0
    %64 = vmatpush.msra.mxu0 0.0
    %65 = vmatpush.msra.mxu0 0.0
    %66 = vmatpush.msra.mxu0 %v48
    %67 = vmatpush.msra.mxu0 %v47
    %68 = vmatpush.msra.mxu0 %v46
    %69 = vmatpush.msra.mxu0 %v45
    %70 = vmatmul.f32.gmra.mxu0 %v52
    %v71 = vpop.f32.mrf.mxu0
    %v72 = vadd.f32 0.0, %v71
    %73 = vdwg.mxu0
    %v74 = vld [vmem:[%s2] sm:$0x1]
    %v76 = vperm.slane %v74, 0
    %v78 = vsub.f32 %v72, %v76
    %v79 = vmul.f32 %v78, 0.70710677
    %v80 = vmul.f32 %v79, %v79
    %v81 = vmin.f32 16.0, %v80
    %v82 = vmul.f32 %v81, 2.1237322e-06
    %v83 = vadd.f32 %v82, 0.00028619796
    %v84 = vmul.f32 %v81, %v83
    %v85 = vadd.f32 %v84, 0.0036580483
    %v86 = vmul.f32 %v81, %v85
    %v87 = vadd.f32 %v86, 0.05243302
    %v88 = vmul.f32 %v81, %v87
    %v89 = vadd.f32 %v88, 0.18741608
    %v90 = vmul.f32 %v81, %v89
    %v91 = vadd.f32 %v90, 1.1283791
    %v92 = vmul.f32 %v79, %v91
    %v93 = vmul.f32 %v81, 3.8918573e-05
    %v94 = vadd.f32 %v93, 0.001143296
    %v95 = vmul.f32 %v81, %v94
    %v96 = vadd.f32 %v95, 0.014752088
    %v97 = vmul.f32 %v81, %v96
    %v98 = vadd.f32 %v97, 0.112945676
    %v99 = vmul.f32 %v81, %v98
    %v100 = vadd.f32 %v99, 0.4994258
    %v101 = vmul.f32 %v81, %v100
    %v102 = vadd.f32 %v101, 1.0
    %v103 = vrcp.pop %v102
    %v104 = vmul.f32 %v102, %v103
    %v105 = vsub.f32 1.0, %v104
    %v106 = vmul.f32 %v103, %v105
    %v107 = vadd.f32 %v103, %v106
    %vm108 = vweird.f32 %v102
    %vm109 = vweird.f32 %v103
    %vm110 = vmor %vm108, %vm109
    %v111 = vsel %vm110, %v103, %v107
    %v112 = vand.u32 2147483647, %v102
    %vm113 = vcmp.eq.f32.partialorder %v112, 8.507059e+37
    %v114 = vand.u32 %v102, 2147483648
    %v115 = vor.u32 1.1754944e-38, %v114
    %v116 = vsel %vm113, %v115, %v111
    %v117 = vmul.f32 %v92, %v116
    %v118 = vmin.f32 %v117, 1.0
    %v119 = vmax.f32 %v118, -1.0
    %v120 = vmul.f32 %v78, %v119
    %121 = vst [vmem:[#allocation7] sm:$0xff] %v120
    // Predicated region
    $region22: #{tpu_custom_call.1} parent=1 // pred_check
      _
    $region23: #{tpu_custom_call.1} parent=1 // pred_check_branch
      %123 = sbr.rel (0) target = $region25
    $region24: #{tpu_custom_call.1} parent=1 // pred_region
      %125 = vsyncadd [#allocation4], 0
      %s127 = sshll.u32 [#allocation7], 4
      %s128 = int_to_ptr.vmem [resolvable:$true] %s127
      %s129 = sshll.u32 %s3, 4
      %s130 = int_to_ptr.hbm [resolvable:$true] %s129
      %132 = dma.vmem_to_hbm [thread:$0]  %s128, 128, %s130, [#allocation4]
    $region25: #{tpu_custom_call.1} parent=1 // pred_fallthru
      _
    // Predicated region
    $region26: #{tpu_custom_call.1} parent=1 // pred_check
      _
    $region27: #{tpu_custom_call.1} parent=1 // pred_check_branch
      %134 = sbr.rel (0) target = $region29
    $region28: #{tpu_custom_call.1} parent=1 // pred_region
      %136 = dma.done [#allocation4], 128
    $region29: #{tpu_custom_call.1} parent=1 // pred_fallthru
      _
    %137 = vsyncpa [#allocation3], 1
    %138 = vsyncpa [#allocation6], 1
    %139 = vsyncpa [#allocation4], 1

</llo_original>
